<compile_context>
chip_gen: v7x
topology: tpu7x:2x2x1
jax: 0.10.0
libtpu: 0.0.40
codegen_flags: <defaults>
</compile_context>

<pallas_src>
import math
import jax
import jax.numpy as jnp
from jax.experimental import pallas as pl
from jax.experimental.pallas import tpu as pltpu

LATENT_SAMPLING_RATE = 75          # Encodec 24 kHz latent frame rate
# Registered as a buffer in the reference module but NOT used by the l1/pred_v
# training loss path, so no min-SNR weighting is applied (intentional).
MIN_SNR_GAMMA = 5


# ----------------------------------------------------------------------------
# cosine schedule + time_to_alpha (scale = 1.0), plain-JAX glue
# ----------------------------------------------------------------------------
def _cosine_schedule(t, start=0.0, end=1.0, tau=1.0, clip_min=1e-9):
    power = 2.0 * tau
    v_start = math.cos(start * math.pi / 2.0) ** power
    v_end = math.cos(end * math.pi / 2.0) ** power
    out = jnp.cos((t * (end - start) + start) * math.pi / 2.0) ** power
    out = (v_end - out) / (v_end - v_start)
    return jnp.clip(out, clip_min, 1.0)


def time_to_alpha(t, scale=1.0):
    alpha = _cosine_schedule(t)
    log_snr = jnp.clip(jnp.log(alpha / jnp.clip(1.0 - alpha, 1e-20)), -15.0, 15.0)
    shifted = log_snr + 2.0 * math.log(scale)
    return jax.nn.sigmoid(shifted)


# ----------------------------------------------------------------------------
# Fused Pallas kernel.
# Data layout: lane axis = b*L + l (batch folded into lanes), sublanes = channels.
#   x_ref    (C, TN)  raw audio latent tile (std scaling folded into rows)
#   n_ref    (C, TN)  gaussian noise tile
#   rows_ref (8, TN)  per-lane coefficient / weight rows (f32):
#       row 0: coeff of x in z_t    = std * (fill + (1-fill)*sqrt(alpha))
#       row 1: coeff of n in z_t    = (1-fill) * sqrt(1-alpha)
#       row 2: coeff of x in v_tgt  = -std * sqrt(1-alpha)
#       row 3: coeff of n in v_tgt  = sqrt(alpha)
#       row 4: per-lane loss weight = loss_mask / (den_b * B * C)
#       rows 5..7: zero padding
#   extra_ref (Kx, TN) bf16: [fill row ; per-sample one-hot rows ; zero pad]
#   w1_ref    (H, C)  bf16, wx_ref (H, Kx) bf16 [w_inp | cond.T | 0], w2 (C, H) bf16
#   loss_ref  SMEM (1,) f32 output, acc_ref SMEM (1,) f32 scratch accumulator
# ----------------------------------------------------------------------------
def diffusion_loss_kernel(x_ref, n_ref, rows_ref, extra_ref,
                          w1_ref, wx_ref, w2_ref,
                          loss_ref, acc_ref):
    j = pl.program_id(0)

    @pl.when(j == 0)
    def _():
        acc_ref[0] = jnp.float32(0.0)

    x = x_ref[...]
    n = n_ref[...]
    rows = rows_ref[...]
    cxz = rows[0:1, :]
    cnz = rows[1:2, :]
    cxv = rows[2:3, :]
    cnv = rows[3:4, :]
    w = rows[4:5, :]

    # q_sample + inpainting fill and velocity target, fully in f32 on the VPU
    # (std_scale / sqrt(alpha) / fill are pre-folded into the coefficient rows).
    z = cxz * x + cnz * n                     # (C, TN)
    v_tgt = cxv * x + cnv * n                 # (C, TN)

    # Synthetic denoiser (channel MLP). Conditioning (time, pooled text, bias,
    # inpainting embed) is folded into the second tiny bf16 matmul.
    h = (jnp.dot(w1_ref[...], z.astype(jnp.bfloat16),
                 preferred_element_type=jnp.float32)
         + jnp.dot(wx_ref[...], extra_ref[...],
                   preferred_element_type=jnp.float32))          # (H, TN)
    # GELU (tanh approx) kept in f32 (v5e VPU/EUP have no bf16).
    h = 0.5 * h * (1.0 + jnp.tanh(0.7978845608028654 *
                                  (h + 0.044715 * h * h * h)))
    pred_v = jnp.dot(w2_ref[...], h.astype(jnp.bfloat16),
                     preferred_element_type=jnp.float32)          # (C, TN)

    # NOTE: pred_x_start / pred_eps are derived from pred_v in the reference but
    # unused by the 'pred_v' objective loss -> elided (dead code).

    # L1 loss; channel mean, per-sample masked length mean and batch mean are all
    # folded into the per-lane weight row -> single weighted reduction.
    l = jnp.sum(jnp.abs(pred_v - v_tgt), axis=0, keepdims=True)   # (1, TN)
    acc_ref[0] = acc_ref[0] + jnp.sum(l * w)

    @pl.when(j == pl.num_programs(0) - 1)
    def _():
        loss_ref[0] = acc_ref[0]


# ----------------------------------------------------------------------------
# Wrapper: randomness / schedule / conditioning glue (tiny, scalar-ish) + one
# pallas_call over lane tiles of the (C, B*L) slab.
# ----------------------------------------------------------------------------
def gaussian_diffusion_forward(data, params, key):
    audio_latent = data["audio_latent"]        # (B, C, L) stand-in for EncodecWrapper.encode(wav)
    text_cond = data["text_cond"]              # (B, S, Dt) stand-in for T5 last_hidden_state
    attention_mask = data["attention_mask"]    # (B, S) bool
    audio_mask = data["audio_mask"]            # (B, L) bool
    audio_duration = data["audio_duration"]    # (B,)

    B, C, L = audio_latent.shape
    H = params["w1"].shape[0]
    N = B * L

    k_unc, k_t, k_noise, k_inpb, k_dur = jax.random.split(key, 5)

    # scale_by_std: reference computes gathered_audio_latent.flatten().std()
    # (all positions, incl. padding; torch std is unbiased -> ddof=1).
    std_scale = 1.0 / jnp.std(audio_latent.astype(jnp.float32), ddof=1)

    # unconditional dropout of the text conditioning
    text_cond_mask = attention_mask.astype(bool)
    unc = jax.random.bernoulli(k_unc, 0.2, (B,))
    text_cond_mask = jnp.where(unc[:, None], False, text_cond_mask)

    # diffusion time / alpha
    times = jax.random.uniform(k_t, (B,), dtype=jnp.float32)
    alpha = time_to_alpha(times).astype(jnp.float32)
    sa = jnp.sqrt(alpha)                       # sqrt(alpha)      (= time_cond)
    soma = jnp.sqrt(1.0 - alpha)               # sqrt(1 - alpha)

    # noise ~ randn_like(audio_latent); generated directly in (C, B, L) layout
    # (iid gaussian, so distribution-equivalent; avoids a wrapper transpose).
    # NOTE: could instead be generated in-kernel (pltpu.prng_seed +
    # pltpu.stateful_normal) to halve kernel input HBM bytes at production sizes;
    # kept host-side to preserve the jax.random stream.
    noise_cn = jax.random.normal(k_noise, (C, B, L), dtype=jnp.float32)

    # inpainting masks
    mode, conc = 0.01, 5.0
    beta_a = mode * (conc - 2.0) + 1.0
    beta_b = (1.0 - mode) * (conc - 2.0) + 1.0
    inp_batch = jax.random.bernoulli(k_inpb, 0.5, (B,))
    durations = jax.random.beta(k_dur, beta_a, beta_b, (B,)) * audio_duration
    n_frames = jnp.round(durations * LATENT_SAMPLING_RATE).astype(jnp.int32)
    idx = jnp.arange(L, dtype=jnp.int32)
    length_mask = idx[None, :] <= n_frames[:, None]            # (B, L)
    fill = (length_mask & inp_batch[:, None]).astype(jnp.float32)
    amask = audio_mask.astype(jnp.float32)

    # loss mask + per-sample masked-mean normalization, folded into one weight row.
    # final loss == mean over per-sample masked means
    #            == torch.cat([diff_loss, inpainting_loss]).mean()  (one scalar / sample).
    lmask = jnp.where(inp_batch[:, None],
                      (1.0 - length_mask.astype(jnp.float32)) * amask, amask)
    den = jnp.maximum(jnp.sum(lmask, axis=-1), 1e-5)           # (B,)
    w_row = lmask / (den[:, None] * float(B * C))              # (B, L)

    # per-lane coefficient rows (std scale, schedule and fill all folded in here,
    # so the kernel consumes the RAW latent -> no pre-scaling pass in the wrapper)
    cxz = std_scale * (fill + (1.0 - fill) * sa[:, None])
    cnz = (1.0 - fill) * soma[:, None]
    cxv = jnp.broadcast_to((-std_scale * soma)[:, None], (B, L))
    cnv = jnp.broadcast_to(sa[:, None], (B, L))
    rows = jnp.concatenate(
        [jnp.stack([cxz, cnz, cxv, cnv, w_row], axis=0),
         jnp.zeros((3, B, L), jnp.float32)], axis=0).reshape(8, N)

    # conditioning vector per sample: time_cond*w_time + pooled_text@w_text + b_h
    tmask = text_cond_mask.astype(jnp.float32)
    denom_t = jnp.maximum(tmask.sum(-1, keepdims=True), 1e-5)
    text_pool = (text_cond * tmask[..., None]).sum(1) / denom_t           # (B, Dt)
    cond = (sa[:, None] * params["w_time"][None, :]
            + text_pool @ params["w_text"] + params["b_h"][None, :])      # (B, H)

    # fold conditioning + inpainting embed into a second tiny matmul:
    #   extra rows = [fill ; one-hot(sample) ; 0-pad],  wx = [w_inp | cond.T | 0]
    Kx = ((1 + B + 7) // 8) * 8
    seg_rows = jnp.broadcast_to(jnp.eye(B, dtype=jnp.float32)[:, :, None],
                                (B, B, L)).reshape(B, N)
    extra = jnp.concatenate(
        [fill.reshape(1, N), seg_rows,
         jnp.zeros((Kx - 1 - B, N), jnp.float32)], axis=0).astype(jnp.bfloat16)
    wx = jnp.concatenate(
        [params["w_inp"], cond.T,
         jnp.zeros((H, Kx - 1 - B), jnp.float32)], axis=1).astype(jnp.bfloat16)

    # lane-dense (C, B*L) slabs (layout plumbing only; latent stays unscaled).
    x2 = jnp.transpose(audio_latent, (1, 0, 2)).reshape(C, N).astype(jnp.float32)
    n2 = noise_cn.reshape(C, N)

    w1b = params["w1"].astype(jnp.bfloat16)
    w2b = params["w2"].astype(jnp.bfloat16)

    # lane tiling: multiple of 256 (v6e/v7x MXU width); tiles keep VMEM bounded
    # on v7x (64 MiB) when B*L grows. Set vmem_limit_bytes explicitly if the
    # latent dims scale to production sizes.
    TN = N if N <= 2048 else 2048
    assert N % TN == 0, "B*L must be a multiple of the lane tile"
    G = N // TN

    loss_out = pl.pallas_call(
        diffusion_loss_kernel,
        out_shape=jax.ShapeDtypeStruct((1,), jnp.float32),
        grid=(G,),
        in_specs=[
            pl.BlockSpec((C, TN), lambda j: (0, j)),      # raw latent
            pl.BlockSpec((C, TN), lambda j: (0, j)),      # noise
            pl.BlockSpec((8, TN), lambda j: (0, j)),      # coefficient/weight rows
            pl.BlockSpec((Kx, TN), lambda j: (0, j)),     # fill + one-hot rows (bf16)
            pl.BlockSpec((H, C), lambda j: (0, 0)),       # W1 (bf16)
            pl.BlockSpec((H, Kx), lambda j: (0, 0)),      # [w_inp | cond.T] (bf16)
            pl.BlockSpec((C, H), lambda j: (0, 0)),       # W2 (bf16)
        ],
        out_specs=pl.BlockSpec(memory_space=pltpu.MemorySpace.SMEM),
        scratch_shapes=[pltpu.SMEM((1,), jnp.float32)],
        # "arbitrary": the scalar accumulator carries across lane tiles; with >1
        # tile on v7x one could instead emit per-tile partials and mark "parallel".
        compiler_params=pltpu.CompilerParams(dimension_semantics=("arbitrary",)),
    )(x2, n2, rows, extra, w1b, wx, w2b)

    return loss_out[0]


# ----------------------------------------------------------------------------
def make_params(C, H, Dt, key):
    k1, k2, k3, k4, k5 = jax.random.split(key, 5)
    return {
        "w1": (jax.random.normal(k1, (H, C)) / math.sqrt(C)).astype(jnp.float32),
        "w2": (jax.random.normal(k2, (C, H)) / math.sqrt(H)).astype(jnp.float32),
        "w_text": (jax.random.normal(k3, (Dt, H)) / math.sqrt(Dt)).astype(jnp.float32),
        "w_time": jax.random.normal(k4, (H,)).astype(jnp.float32),
        "b_h": jnp.zeros((H,), jnp.float32),
        "w_inp": (0.1 * jax.random.normal(k5, (H, 1))).astype(jnp.float32),
    }


if __name__ == "__main__":
    B, C, L = 2, 8, 128          # batch, audio latent channels, latent length
    S, Dt, H = 16, 32, 32        # text seq len, text dim, denoiser hidden dim

    key = jax.random.PRNGKey(0)
    k_text, k_audio, k_params, k_fwd = jax.random.split(key, 4)

    # TODO(synk): T5 text encoder + Encodec audio codec + EMA U-Net are external
    # pretrained models; stood in for with deterministic synthetic tensors.
    data = {
        "text_cond": jax.random.normal(k_text, (B, S, Dt), dtype=jnp.float32),
        "attention_mask": jnp.concatenate(
            [jnp.ones((B, S - 4), bool), jnp.zeros((B, 4), bool)], axis=1),
        "audio_latent": jax.random.normal(k_audio, (B, C, L), dtype=jnp.float32),
        "audio_duration": jnp.array([1.2, 0.9], jnp.float32),
        "audio_mask": jnp.stack([
            jnp.arange(L) < 120,
            jnp.arange(L) < 96,
        ]).astype(bool),
    }

    params = make_params(C, H, Dt, k_params)

    loss = jax.jit(gaussian_diffusion_forward)(data, params, k_fwd)
    loss = jax.block_until_ready(loss)
    assert loss.shape == () and bool(jnp.isfinite(loss))
    print("KERNEL_OK")
</pallas_src>

<mosaic_0001>
module attributes {stable_mosaic.version = 11 : i64} {
  func.func @diffusion_loss_kernel(%arg0: i32, %arg1: memref<8x256xf32, #tpu.memory_space<vmem>>, %arg2: memref<8x256xf32, #tpu.memory_space<vmem>>, %arg3: memref<8x256xf32, #tpu.memory_space<vmem>>, %arg4: memref<8x256xbf16, #tpu.memory_space<vmem>>, %arg5: memref<32x8xbf16, #tpu.memory_space<vmem>>, %arg6: memref<32x8xbf16, #tpu.memory_space<vmem>>, %arg7: memref<8x32xbf16, #tpu.memory_space<vmem>>, %arg8: memref<1xf32, #tpu.memory_space<smem>>, %arg9: memref<1xf32, #tpu.memory_space<smem>>) attributes {dimension_semantics = [#tpu.dimension_semantics<arbitrary>], iteration_bounds = array<i64: 1>, scalar_prefetch = 0 : i64, scratch_operands = 1 : i64, tpu.core_type = #tpu.core_type<tc>, window_params = [{transform_indices = @transform_0, window_bounds = array<i64: 8, 256>}, {transform_indices = @transform_1, window_bounds = array<i64: 8, 256>}, {transform_indices = @transform_2, window_bounds = array<i64: 8, 256>}, {transform_indices = @transform_3, window_bounds = array<i64: 8, 256>}, {pipeline_mode = #tpu.pipeline_mode<synchronous>, transform_indices = @transform_4, window_bounds = array<i64: 32, 8>}, {pipeline_mode = #tpu.pipeline_mode<synchronous>, transform_indices = @transform_5, window_bounds = array<i64: 32, 8>}, {pipeline_mode = #tpu.pipeline_mode<synchronous>, transform_indices = @transform_6, window_bounds = array<i64: 8, 32>}, {transform_indices = @transform_7, window_bounds = array<i64: 1>}]} {
    %c0_i32 = arith.constant 0 : i32
    %0 = arith.cmpi eq, %arg0, %c0_i32 : i32
    %1 = arith.extui %0 : i1 to i32
    %c0_i32_0 = arith.constant 0 : i32
    %2 = arith.cmpi ne, %1, %c0_i32_0 : i32
    scf.if %2 {
      %cst_26 = arith.constant 0.000000e+00 : f32
      %c0_27 = arith.constant 0 : index
      %59 = memref.load %arg9[%c0_27] : memref<1xf32, #tpu.memory_space<smem>>
      memref.store %cst_26, %arg9[%c0_27] : memref<1xf32, #tpu.memory_space<smem>>
    } else {
    }
    %c0 = arith.constant 0 : index
    %c0_1 = arith.constant 0 : index
    %3 = vector.load %arg1[%c0, %c0_1] : memref<8x256xf32, #tpu.memory_space<vmem>>, vector<8x256xf32>
    %c0_2 = arith.constant 0 : index
    %c0_3 = arith.constant 0 : index
    %4 = vector.load %arg2[%c0_2, %c0_3] : memref<8x256xf32, #tpu.memory_space<vmem>>, vector<8x256xf32>
    %c0_4 = arith.constant 0 : index
    %c0_5 = arith.constant 0 : index
    %5 = vector.load %arg3[%c0_4, %c0_5] : memref<8x256xf32, #tpu.memory_space<vmem>>, vector<8x256xf32>
    %6 = vector.extract_strided_slice %5 {offsets = [0, 0], sizes = [1, 256], strides = [1, 1]} : vector<8x256xf32> to vector<1x256xf32>
    %7 = vector.extract_strided_slice %5 {offsets = [1, 0], sizes = [1, 256], strides = [1, 1]} : vector<8x256xf32> to vector<1x256xf32>
    %8 = vector.extract_strided_slice %5 {offsets = [2, 0], sizes = [1, 256], strides = [1, 1]} : vector<8x256xf32> to vector<1x256xf32>
    %9 = vector.extract_strided_slice %5 {offsets = [3, 0], sizes = [1, 256], strides = [1, 1]} : vector<8x256xf32> to vector<1x256xf32>
    %10 = vector.extract_strided_slice %5 {offsets = [4, 0], sizes = [1, 256], strides = [1, 1]} : vector<8x256xf32> to vector<1x256xf32>
    %11 = vector.broadcast %6 : vector<1x256xf32> to vector<8x256xf32>
    %12 = arith.mulf %11, %3 : vector<8x256xf32>
    %13 = vector.broadcast %7 : vector<1x256xf32> to vector<8x256xf32>
    %14 = arith.mulf %13, %4 : vector<8x256xf32>
    %15 = arith.addf %12, %14 : vector<8x256xf32>
    %16 = vector.broadcast %8 : vector<1x256xf32> to vector<8x256xf32>
    %17 = arith.mulf %16, %3 : vector<8x256xf32>
    %18 = vector.broadcast %9 : vector<1x256xf32> to vector<8x256xf32>
    %19 = arith.mulf %18, %4 : vector<8x256xf32>
    %20 = arith.addf %17, %19 : vector<8x256xf32>
    %c0_6 = arith.constant 0 : index
    %c0_7 = arith.constant 0 : index
    %21 = vector.load %arg5[%c0_6, %c0_7] : memref<32x8xbf16, #tpu.memory_space<vmem>>, vector<32x8xbf16>
    %22 = arith.truncf %15 : vector<8x256xf32> to vector<8x256xbf16>
    %cst = arith.constant dense<0.000000e+00> : vector<32x256xf32>
    %23 = tpu.matmul %21, %22, %cst {dimension_numbers = #tpu.dot_dimension_numbers<[1], [0], [0], [1], [0, 0, 1, 1], [], []>} : vector<32x8xbf16>, vector<8x256xbf16>, vector<32x256xf32> -> vector<32x256xf32>
    %c0_8 = arith.constant 0 : index
    %c0_9 = arith.constant 0 : index
    %24 = vector.load %arg6[%c0_8, %c0_9] : memref<32x8xbf16, #tpu.memory_space<vmem>>, vector<32x8xbf16>
    %c0_10 = arith.constant 0 : index
    %c0_11 = arith.constant 0 : index
    %25 = vector.load %arg4[%c0_10, %c0_11] : memref<8x256xbf16, #tpu.memory_space<vmem>>, vector<8x256xbf16>
    %cst_12 = arith.constant dense<0.000000e+00> : vector<32x256xf32>
    %26 = tpu.matmul %24, %25, %cst_12 {dimension_numbers = #tpu.dot_dimension_numbers<[1], [0], [0], [1], [0, 0, 1, 1], [], []>} : vector<32x8xbf16>, vector<8x256xbf16>, vector<32x256xf32> -> vector<32x256xf32>
    %27 = arith.addf %23, %26 : vector<32x256xf32>
    %cst_13 = arith.constant 5.000000e-01 : f32
    %28 = vector.broadcast %cst_13 : f32 to vector<32x256xf32>
    %29 = arith.mulf %28, %27 : vector<32x256xf32>
    %cst_14 = arith.constant 4.471500e-02 : f32
    %30 = vector.broadcast %cst_14 : f32 to vector<32x256xf32>
    %31 = arith.mulf %30, %27 : vector<32x256xf32>
    %32 = arith.mulf %31, %27 : vector<32x256xf32>
    %33 = arith.mulf %32, %27 : vector<32x256xf32>
    %34 = arith.addf %27, %33 : vector<32x256xf32>
    %cst_15 = arith.constant 0.797884583 : f32
    %35 = vector.broadcast %cst_15 : f32 to vector<32x256xf32>
    %36 = arith.mulf %35, %34 : vector<32x256xf32>
    %37 = math.tanh %36 : vector<32x256xf32>
    %cst_16 = arith.constant 1.000000e+00 : f32
    %38 = vector.broadcast %cst_16 : f32 to vector<32x256xf32>
    %39 = arith.addf %38, %37 : vector<32x256xf32>
    %40 = arith.mulf %29, %39 : vector<32x256xf32>
    %c0_17 = arith.constant 0 : index
    %c0_18 = arith.constant 0 : index
    %41 = vector.load %arg7[%c0_17, %c0_18] : memref<8x32xbf16, #tpu.memory_space<vmem>>, vector<8x32xbf16>
    %42 = arith.truncf %40 : vector<32x256xf32> to vector<32x256xbf16>
    %cst_19 = arith.constant dense<0.000000e+00> : vector<8x256xf32>
    %43 = tpu.matmul %41, %42, %cst_19 {dimension_numbers = #tpu.dot_dimension_numbers<[1], [0], [0], [1], [0, 0, 1, 1], [], []>} : vector<8x32xbf16>, vector<32x256xbf16>, vector<8x256xf32> -> vector<8x256xf32>
    %44 = arith.subf %43, %20 : vector<8x256xf32>
    %45 = math.absf %44 : vector<8x256xf32>
    %cst_20 = arith.constant dense<0.000000e+00> : vector<256xf32>
    %46 = vector.multi_reduction <add>, %45, %cst_20 [0] : vector<8x256xf32> to vector<256xf32>
    %47 = vector.shape_cast %46 : vector<256xf32> to vector<1x256xf32>
    %c0_21 = arith.constant 0 : index
    %48 = memref.load %arg9[%c0_21] : memref<1xf32, #tpu.memory_space<smem>>
    %49 = arith.mulf %47, %10 : vector<1x256xf32>
    %50 = vector.shape_cast %49 : vector<1x256xf32> to vector<1x1x256xf32>
    %cst_22 = arith.constant dense<0.000000e+00> : vector<1xf32>
    %51 = vector.multi_reduction <add>, %50, %cst_22 [1, 2] : vector<1x1x256xf32> to vector<1xf32>
    %52 = vector.shape_cast %51 : vector<1xf32> to vector<1x1x1xf32>
    %53 = vector.extract %52[0, 0, 0] : f32 from vector<1x1x1xf32>
    %54 = arith.addf %48, %53 : f32
    %c0_23 = arith.constant 0 : index
    %55 = memref.load %arg9[%c0_23] : memref<1xf32, #tpu.memory_space<smem>>
    memref.store %54, %arg9[%c0_23] : memref<1xf32, #tpu.memory_space<smem>>
    %c0_i32_24 = arith.constant 0 : i32
    %56 = arith.cmpi eq, %arg0, %c0_i32_24 : i32
    %57 = arith.extui %56 : i1 to i32
    %c0_i32_25 = arith.constant 0 : i32
    %58 = arith.cmpi ne, %57, %c0_i32_25 : i32
    scf.if %58 {
      %c0_26 = arith.constant 0 : index
      %59 = memref.load %arg9[%c0_26] : memref<1xf32, #tpu.memory_space<smem>>
      %c0_27 = arith.constant 0 : index
      %60 = memref.load %arg8[%c0_27] : memref<1xf32, #tpu.memory_space<smem>>
      memref.store %59, %arg8[%c0_27] : memref<1xf32, #tpu.memory_space<smem>>
    } else {
    }
    return
  }
  func.func @transform_0(%arg0: i32) -> (i32, i32) {
    %c0_i32 = arith.constant 0 : i32
    %c0_i32_0 = arith.constant 0 : i32
    return %c0_i32, %arg0 : i32, i32
  }
  func.func @transform_1(%arg0: i32) -> (i32, i32) {
    %c0_i32 = arith.constant 0 : i32
    %c0_i32_0 = arith.constant 0 : i32
    return %c0_i32, %arg0 : i32, i32
  }
  func.func @transform_2(%arg0: i32) -> (i32, i32) {
    %c0_i32 = arith.constant 0 : i32
    %c0_i32_0 = arith.constant 0 : i32
    return %c0_i32, %arg0 : i32, i32
  }
  func.func @transform_3(%arg0: i32) -> (i32, i32) {
    %c0_i32 = arith.constant 0 : i32
    %c0_i32_0 = arith.constant 0 : i32
    return %c0_i32, %arg0 : i32, i32
  }
  func.func @transform_4(%arg0: i32) -> (i32, i32) {
    %c0_i32 = arith.constant 0 : i32
    %c0_i32_0 = arith.constant 0 : i32
    %c0_i32_1 = arith.constant 0 : i32
    return %c0_i32, %c0_i32_0 : i32, i32
  }
  func.func @transform_5(%arg0: i32) -> (i32, i32) {
    %c0_i32 = arith.constant 0 : i32
    %c0_i32_0 = arith.constant 0 : i32
    %c0_i32_1 = arith.constant 0 : i32
    return %c0_i32, %c0_i32_0 : i32, i32
  }
  func.func @transform_6(%arg0: i32) -> (i32, i32) {
    %c0_i32 = arith.constant 0 : i32
    %c0_i32_0 = arith.constant 0 : i32
    %c0_i32_1 = arith.constant 0 : i32
    return %c0_i32, %c0_i32_0 : i32, i32
  }
  func.func @transform_7(%arg0: i32) -> i32 {
    %c0_i32 = arith.constant 0 : i32
    %c0_i32_0 = arith.constant 0 : i32
    return %c0_i32 : i32
  }
}

</mosaic_0001>

<llo_original>
// kernel: le.16
$region0: #{le.16}
  #allocation0 [shape = 's32[1]{0}', space=sflag, size = 0x4, scoped, tag = 'scoped memory for le.16']
  %s0 = inlined_call_operand.vmem [shape: s32[2], index: 0, kind: input, shape index: {}]
  %s1 = inlined_call_operand.vmem [shape: s32[2,128], index: 1, kind: output, shape index: {}]
  // Predicated region
  $region2: #{le.16} parent=0 // pred_check
    _
  $region3: #{le.16} parent=0 // pred_check_branch
    %3 = sbr.rel (0) target = $region5
  $region4: #{le.16} parent=0 // pred_region
    _
  $region5: #{le.16} parent=0 // pred_fallthru
    _
  %v4 = vld [vmem:[%s0] ss:$0 sm:$0xff]
  %6 = vbcast.lane.b32.xlu0 %v4, 256
  %v7 = vpop.permute.xlu0 %6
  %8 = vst [vmem:[%s1] sm:$0x3] %v7

// kernel: gaussian_diffusion_forward.5
$region0: #{gaussian_diffusion_forward.5}
  #allocation0 [shape = 'u32[]', space=smem, size = 0x4, offset = 0x4, fixed_abs, tag = 'smem constant byte address 0x4 - core index']
  #allocation1 [shape = 'u32[144,128]{1,0:T(1,128)}', space=vmem, size = 0x12000, scoped, tag = 'internal scratch']
  #allocation2 [shape = 'f32[1]{0:T(128)}', space=smem, size = 0x200, scoped, tag = 'scratch operand']
  %s0 = inlined_call_operand.vmem [shape: f32[8,256], index: 0, kind: input, shape index: {}]
  %s1 = inlined_call_operand.vmem [shape: f32[8,256], index: 1, kind: input, shape index: {}]
  %s2 = inlined_call_operand.vmem [shape: f32[8,256], index: 2, kind: input, shape index: {}]
  %s3 = inlined_call_operand.vmem [shape: bf16[8,256], index: 3, kind: input, shape index: {}]
  %s4 = inlined_call_operand.vmem [shape: bf16[32,8], index: 4, kind: input, shape index: {}]
  %s5 = inlined_call_operand.vmem [shape: bf16[32,8], index: 5, kind: input, shape index: {}]
  %s6 = inlined_call_operand.vmem [shape: bf16[8,32], index: 6, kind: input, shape index: {}]
  %s7 = inlined_call_operand.hbm [shape: f32[1], index: 7, kind: output, shape index: {}]
  %s8 = sld [smem:[#allocation0]]
  $region46: #{gaussian_diffusion_forward.5} parent=0
    _
  %s10 = ssub.s32 1, %s8
  %s11 = scalar_select 0, %s10, %s8
  $region1: #{gaussian_diffusion_forward.5} parent=0
    #allocation3 [shape = 'u8[512]{0}', space=smem, size = 0x200, scoped, tag = 'output window, operand 0, single buffered']
    #allocation4 [shape = 's32[1]{0}', space=sflag, size = 0x4, scoped, tag = 'scoped memory for gaussian_diffusion_forward.5']
    %12 = vsyncpa [#allocation4], 0
    // Predicated region
    $region2: #{gaussian_diffusion_forward.5} parent=1 // pred_check
      _
    $region3: #{gaussian_diffusion_forward.5} parent=1 // pred_check_branch
      %14 = sbr.rel (0) target = $region5
    $region4: #{gaussian_diffusion_forward.5} parent=1 // pred_region
      _
    $region5: #{gaussian_diffusion_forward.5} parent=1 // pred_fallthru
      _
    // Predicated region
    $region6: #{gaussian_diffusion_forward.5} parent=1 // pred_check
      _
    $region7: #{gaussian_diffusion_forward.5} parent=1 // pred_check_branch
      %16 = sbr.rel (0) target = $region9
    $region8: #{gaussian_diffusion_forward.5} parent=1 // pred_region
      _
    $region9: #{gaussian_diffusion_forward.5} parent=1 // pred_fallthru
      _
    // Predicated region
    $region10: #{gaussian_diffusion_forward.5} parent=1 // pred_check
      _
    $region11: #{gaussian_diffusion_forward.5} parent=1 // pred_check_branch
      %18 = sbr.rel (0) target = $region13
    $region12: #{gaussian_diffusion_forward.5} parent=1 // pred_region
      _
    $region13: #{gaussian_diffusion_forward.5} parent=1 // pred_fallthru
      _
    // Predicated region
    $region14: #{gaussian_diffusion_forward.5} parent=1 // pred_check
      _
    $region15: #{gaussian_diffusion_forward.5} parent=1 // pred_check_branch
      %20 = sbr.rel (0) target = $region17
    $region16: #{gaussian_diffusion_forward.5} parent=1 // pred_region
      _
    $region17: #{gaussian_diffusion_forward.5} parent=1 // pred_fallthru
      _
    // Predicated region
    $region18: #{gaussian_diffusion_forward.5} parent=1 // pred_check
      _
    $region19: #{gaussian_diffusion_forward.5} parent=1 // pred_check_branch
      %22 = sbr.rel (0) target = $region21
    $region20: #{gaussian_diffusion_forward.5} parent=1 // pred_region
      _
    $region21: #{gaussian_diffusion_forward.5} parent=1 // pred_fallthru
      _
    // Predicated region
    $region22: #{gaussian_diffusion_forward.5} parent=1 // pred_check
      _
    $region23: #{gaussian_diffusion_forward.5} parent=1 // pred_check_branch
      %24 = sbr.rel (0) target = $region25
    $region24: #{gaussian_diffusion_forward.5} parent=1 // pred_region
      _
    $region25: #{gaussian_diffusion_forward.5} parent=1 // pred_fallthru
      _
    // Predicated region
    $region26: #{gaussian_diffusion_forward.5} parent=1 // pred_check
      _
    $region27: #{gaussian_diffusion_forward.5} parent=1 // pred_check_branch
      %26 = sbr.rel (0) target = $region29
    $region28: #{gaussian_diffusion_forward.5} parent=1 // pred_region
      _
    $region29: #{gaussian_diffusion_forward.5} parent=1 // pred_fallthru
      _
    %p28 = scmp.eq.s32.totalorder 0, 0
    // Predicated region
    $region30: #{gaussian_diffusion_forward.5} parent=1 // pred_check
      %p29 = pneg %p28
    $region31: #{gaussian_diffusion_forward.5} parent=1 // pred_check_branch
      %31 = sbr.rel (%p29) target = $region33
    $region32: #{gaussian_diffusion_forward.5} parent=1 // pred_region
      %s32 = scalar_lea.smem [#allocation2], 0
      %33 = sst [smem:[%s32]] 0.0
    $region33: #{gaussian_diffusion_forward.5} parent=1 // pred_fallthru
      _
    %v34 = vld [vmem:[%s0] sm:$0xff]
    %v35 = vld [vmem:[%s0 + $0x8] sm:$0xff]
    %v36 = vld [vmem:[%s1] sm:$0xff]
    %v37 = vld [vmem:[%s1 + $0x8] sm:$0xff]
    %v38 = vld [vmem:[%s2] sm:$0xff]
    %v39 = vld [vmem:[%s2 + $0x8] sm:$0xff]
    %v40 = vlaneseq
    %v41 = vshrl.u32 %v40, 7
    %v42 = vsub.s32 0, %v41
    %v43 = vrot.slane %v38, %v42
    %v44 = vlaneseq
    %v45 = vshrl.u32 %v44, 7
    %v46 = vsub.s32 0, %v45
    %v47 = vrot.slane %v39, %v46
    %v48 = vmul.f32 %v43, %v34
    %v49 = vmul.f32 %v47, %v35
    %v50 = vlaneseq
    %v51 = vshrl.u32 %v50, 7
    %v52 = vsub.s32 1, %v51
    %v53 = vrot.slane %v38, %v52
    %v54 = vlaneseq
    %v55 = vshrl.u32 %v54, 7
    %v56 = vsub.s32 1, %v55
    %v57 = vrot.slane %v39, %v56
    %v58 = vmul.f32 %v53, %v36
    %v59 = vmul.f32 %v57, %v37
    %v60 = vadd.f32 %v48, %v58
    %v61 = vadd.f32 %v49, %v59
    %v62 = vlaneseq
    %v63 = vshrl.u32 %v62, 7
    %v64 = vsub.s32 2, %v63
    %v65 = vrot.slane %v38, %v64
    %v66 = vlaneseq
    %v67 = vshrl.u32 %v66, 7
    %v68 = vsub.s32 2, %v67
    %v69 = vrot.slane %v39, %v68
    %v70 = vmul.f32 %v65, %v34
    %v71 = vmul.f32 %v69, %v35
    %v72 = vlaneseq
    %v73 = vshrl.u32 %v72, 7
    %v74 = vsub.s32 3, %v73
    %v75 = vrot.slane %v38, %v74
    %v76 = vlaneseq
    %v77 = vshrl.u32 %v76, 7
    %v78 = vsub.s32 3, %v77
    %v79 = vrot.slane %v39, %v78
    %v80 = vmul.f32 %v75, %v36
    %v81 = vmul.f32 %v79, %v37
    %v82 = vadd.f32 %v70, %v80
    %v83 = vadd.f32 %v71, %v81
    %v84 = vld [vmem:[%s4] sm:$0xf]
    %v85 = vld [vmem:[%s4 + $0x4] sm:$0xf]
    %v86 = vld [vmem:[%s4 + $0x8] sm:$0xf]
    %v87 = vld [vmem:[%s4 + $0xc] sm:$0xf]
    %v88 = vpack.c.bf16 %v60, %v60
    %v89 = vpack.c.bf16 %v61, %v61
    %v90 = vld [vmem:[%s5] sm:$0xf]
    %v91 = vld [vmem:[%s5 + $0x4] sm:$0xf]
    %v92 = vld [vmem:[%s5 + $0x8] sm:$0xf]
    %v93 = vld [vmem:[%s5 + $0xc] sm:$0xf]
    %v94 = vld [vmem:[%s3] sm:$0xff]
    %v99 = vunpack.c.l.b16 %v90
    %v100 = vunpack.c.l.b16 %v91
    %v101 = vunpack.c.l.b16 %v92
    %v102 = vunpack.c.l.b16 %v93
    %v103 = vpack.c.b16 %v100, %v99
    %v104 = vpack.c.b16 %v102, %v101
    %v106 = vunpack.c.l.b16 %v94
    %v107 = vunpack.c.h.b16 %v94
    %v108 = vpack.c.b16 %v106, %v106
    %v109 = vpack.c.b16 %v107, %v107
    %vm110 = vcmask 64512
    %v112 = vsel %vm110, %v103, 0
    %v115 = vsel %vm110, %v104, 0
    %vm117 = vcmask 1043456
    %v119 = vsel %vm117, %v108, 0
    %v122 = vsel %vm117, %v109, 0
    %124 = vmatprep.subr.bf16.mxu0 %v122
    %125 = vmatpush1.bf16.msra.mxu0 %v119
    %126 = vmatprep.subr.bf16.mxu0 0
    %127 = vmatpush1.bf16.msra.mxu0 0
    %128 = vmatprep.subr.bf16.mxu0 0
    %129 = vmatpush1.bf16.msra.mxu0 0
    %130 = vmatprep.subr.bf16.mxu0 0
    %131 = vmatpush1.bf16.msra.mxu0 0
    %132 = vmatprep.subr.bf16.mxu0 0
    %133 = vmatpush1.bf16.msra.mxu0 0
    %134 = vmatprep.subr.bf16.mxu0 0
    %135 = vmatpush1.bf16.msra.mxu0 0
    %136 = vmatprep.subr.bf16.mxu0 0
    %137 = vmatpush1.bf16.msra.mxu0 0
    %138 = vmatprep.subr.bf16.mxu0 0
    %139 = vmatpush1.bf16.msra.mxu0 0
    %140 = vmatprep.subr.bf16.mxu0 0
    %141 = vmatpush1.bf16.msra.mxu0 0
    %142 = vmatprep.subr.bf16.mxu0 0
    %143 = vmatpush1.bf16.msra.mxu0 0
    %144 = vmatprep.subr.bf16.mxu0 0
    %145 = vmatpush1.bf16.msra.mxu0 0
    %146 = vmatprep.subr.bf16.mxu0 0
    %147 = vmatpush1.bf16.msra.mxu0 0
    %148 = vmatprep.subr.bf16.mxu0 0
    %149 = vmatpush1.bf16.msra.mxu0 0
    %150 = vmatprep.subr.bf16.mxu0 0
    %151 = vmatpush1.bf16.msra.mxu0 0
    %152 = vmatprep.subr.bf16.mxu0 0
    %153 = vmatpush1.bf16.msra.mxu0 0
    %154 = vmatprep.subr.bf16.mxu0 0
    %155 = vmatpush1.bf16.msra.mxu0 0
    %156 = vmatprep.mubr.bf16.mxu0 0
    %157 = vmatmul.mubr.bf16.gmra.mrb[0].mxu0 %v112
    %v158 = vpop.f32.mrb[0].mxu0
    %v159 = vadd.f32 0.0, %v158
    %v160 = vpop.f32.mrb[0].mxu0
    %v161 = vadd.f32 0.0, %v160
    %v162 = vpop.f32.mrb[0].mxu0
    %v163 = vadd.f32 0.0, %v162
    %v164 = vpop.f32.mrb[0].mxu0
    %v165 = vadd.f32 0.0, %v164
    %166 = vmatprep.mubr.bf16.mxu0 0
    %167 = vmatmul.mubr.bf16.gmra.mrb[0].mxu0 %v115
    %v168 = vpop.f32.mrb[0].mxu0
    %v169 = vadd.f32 0.0, %v168
    %v170 = vpop.f32.mrb[0].mxu0
    %v171 = vadd.f32 0.0, %v170
    %v172 = vpop.f32.mrb[0].mxu0
    %v173 = vadd.f32 0.0, %v172
    %v174 = vpop.f32.mrb[0].mxu0
    %v175 = vadd.f32 0.0, %v174
    %176 = vdwg.mxu0
    %v181 = vunpack.c.l.b16 %v84
    %v182 = vunpack.c.l.b16 %v85
    %v183 = vunpack.c.l.b16 %v86
    %v184 = vunpack.c.l.b16 %v87
    %v185 = vpack.c.b16 %v182, %v181
    %v186 = vpack.c.b16 %v184, %v183
    %v188 = vsel %vm110, %v185, 0
    %v191 = vsel %vm110, %v186, 0
    %v194 = vsel %vm117, %v88, 0
    %v197 = vsel %vm117, %v89, 0
    %199 = vmatprep.subr.bf16.mxu0 %v197
    %200 = vmatpush1.bf16.msra.mxu0 %v194
    %201 = vmatprep.subr.bf16.mxu0 0
    %202 = vmatpush1.bf16.msra.mxu0 0
    %203 = vmatprep.subr.bf16.mxu0 0
    %204 = vmatpush1.bf16.msra.mxu0 0
    %205 = vmatprep.subr.bf16.mxu0 0
    %206 = vmatpush1.bf16.msra.mxu0 0
    %207 = vmatprep.subr.bf16.mxu0 0
    %208 = vmatpush1.bf16.msra.mxu0 0
    %209 = vmatprep.subr.bf16.mxu0 0
    %210 = vmatpush1.bf16.msra.mxu0 0
    %211 = vmatprep.subr.bf16.mxu0 0
    %212 = vmatpush1.bf16.msra.mxu0 0
    %213 = vmatprep.subr.bf16.mxu0 0
    %214 = vmatpush1.bf16.msra.mxu0 0
    %215 = vmatprep.subr.bf16.mxu0 0
    %216 = vmatpush1.bf16.msra.mxu0 0
    %217 = vmatprep.subr.bf16.mxu0 0
    %218 = vmatpush1.bf16.msra.mxu0 0
    %219 = vmatprep.subr.bf16.mxu0 0
    %220 = vmatpush1.bf16.msra.mxu0 0
    %221 = vmatprep.subr.bf16.mxu0 0
    %222 = vmatpush1.bf16.msra.mxu0 0
    %223 = vmatprep.subr.bf16.mxu0 0
    %224 = vmatpush1.bf16.msra.mxu0 0
    %225 = vmatprep.subr.bf16.mxu0 0
    %226 = vmatpush1.bf16.msra.mxu0 0
    %227 = vmatprep.subr.bf16.mxu0 0
    %228 = vmatpush1.bf16.msra.mxu0 0
    %229 = vmatprep.subr.bf16.mxu0 0
    %230 = vmatpush1.bf16.msra.mxu0 0
    %231 = vmatprep.mubr.bf16.mxu0 0
    %232 = vmatmul.mubr.bf16.gmra.mrb[0].mxu0 %v188
    %v233 = vpop.f32.mrb[0].mxu0
    %v234 = vadd.f32 %v159, %v233
    %v235 = vpop.f32.mrb[0].mxu0
    %v236 = vadd.f32 %v161, %v235
    %v237 = vpop.f32.mrb[0].mxu0
    %v238 = vadd.f32 %v163, %v237
    %v239 = vpop.f32.mrb[0].mxu0
    %v240 = vadd.f32 %v165, %v239
    %241 = vmatprep.mubr.bf16.mxu0 0
    %242 = vmatmul.mubr.bf16.gmra.mrb[0].mxu0 %v191
    %v243 = vpop.f32.mrb[0].mxu0
    %v244 = vadd.f32 %v169, %v243
    %v245 = vpop.f32.mrb[0].mxu0
    %v246 = vadd.f32 %v171, %v245
    %v247 = vpop.f32.mrb[0].mxu0
    %v248 = vadd.f32 %v173, %v247
    %v249 = vpop.f32.mrb[0].mxu0
    %v250 = vadd.f32 %v175, %v249
    %251 = vdwg.mxu0
    %v252 = vmul.f32 %v234, 0.5
    %v253 = vmul.f32 %v236, 0.5
    %v254 = vmul.f32 %v238, 0.5
    %v255 = vmul.f32 %v240, 0.5
    %v256 = vmul.f32 %v244, 0.5
    %v257 = vmul.f32 %v246, 0.5
    %v258 = vmul.f32 %v248, 0.5
    %v259 = vmul.f32 %v250, 0.5
    %v260 = vmul.f32 %v234, 0.044715
    %v261 = vmul.f32 %v236, 0.044715
    %v262 = vmul.f32 %v238, 0.044715
    %v263 = vmul.f32 %v240, 0.044715
    %v264 = vmul.f32 %v244, 0.044715
    %v265 = vmul.f32 %v246, 0.044715
    %v266 = vmul.f32 %v248, 0.044715
    %v267 = vmul.f32 %v250, 0.044715
    %v268 = vmul.f32 %v260, %v234
    %v269 = vmul.f32 %v261, %v236
    %v270 = vmul.f32 %v262, %v238
    %v271 = vmul.f32 %v263, %v240
    %v272 = vmul.f32 %v264, %v244
    %v273 = vmul.f32 %v265, %v246
    %v274 = vmul.f32 %v266, %v248
    %v275 = vmul.f32 %v267, %v250
    %v276 = vmul.f32 %v268, %v234
    %v277 = vmul.f32 %v269, %v236
    %v278 = vmul.f32 %v270, %v238
    %v279 = vmul.f32 %v271, %v240
    %v280 = vmul.f32 %v272, %v244
    %v281 = vmul.f32 %v273, %v246
    %v282 = vmul.f32 %v274, %v248
    %v283 = vmul.f32 %v275, %v250
    %v284 = vadd.f32 %v234, %v276
    %v285 = vadd.f32 %v236, %v277
    %v286 = vadd.f32 %v238, %v278
    %v287 = vadd.f32 %v240, %v279
    %v288 = vadd.f32 %v244, %v280
    %v289 = vadd.f32 %v246, %v281
    %v290 = vadd.f32 %v248, %v282
    %v291 = vadd.f32 %v250, %v283
    %v292 = vmul.f32 %v284, 0.7978846
    %v293 = vmul.f32 %v285, 0.7978846
    %v294 = vmul.f32 %v286, 0.7978846
    %v295 = vmul.f32 %v287, 0.7978846
    %v296 = vmul.f32 %v288, 0.7978846
    %v297 = vmul.f32 %v289, 0.7978846
    %v298 = vmul.f32 %v290, 0.7978846
    %v299 = vmul.f32 %v291, 0.7978846
    %v300 = vtanh.pop %v292
    %v301 = vtanh.pop %v293
    %v302 = vtanh.pop %v294
    %v303 = vtanh.pop %v295
    %v304 = vtanh.pop %v296
    %v305 = vtanh.pop %v297
    %v306 = vtanh.pop %v298
    %v307 = vtanh.pop %v299
    %v308 = vadd.f32 %v300, 1.0
    %v309 = vadd.f32 %v301, 1.0
    %v310 = vadd.f32 %v302, 1.0
    %v311 = vadd.f32 %v303, 1.0
    %v312 = vadd.f32 %v304, 1.0
    %v313 = vadd.f32 %v305, 1.0
    %v314 = vadd.f32 %v306, 1.0
    %v315 = vadd.f32 %v307, 1.0
    %v316 = vmul.f32 %v252, %v308
    %v317 = vmul.f32 %v253, %v309
    %v318 = vmul.f32 %v254, %v310
    %v319 = vmul.f32 %v255, %v311
    %v320 = vmul.f32 %v256, %v312
    %v321 = vmul.f32 %v257, %v313
    %v322 = vmul.f32 %v258, %v314
    %v323 = vmul.f32 %v259, %v315
    %v324 = vld [vmem:[%s6] sm:$0xf]
    %v325 = vpack.c.bf16 %v318, %v316
    %v326 = vpack.c.bf16 %v319, %v317
    %v327 = vpack.c.bf16 %v322, %v320
    %v328 = vpack.c.bf16 %v323, %v321
    %vm329 = vcmask 261120
    %v331 = vsel %vm329, %v324, 0
    %333 = vmatprep.subr.bf16.mxu0 %v326
    %334 = vmatpush1.bf16.msra.mxu0 %v325
    %335 = vmatprep.subr.bf16.mxu0 %v328
    %336 = vmatpush1.bf16.msra.mxu0 %v327
    %337 = vmatprep.subr.bf16.mxu0 0
    %338 = vmatpush1.bf16.msra.mxu0 0
    %339 = vmatprep.subr.bf16.mxu0 0
    %340 = vmatpush1.bf16.msra.mxu0 0
    %341 = vmatprep.subr.bf16.mxu0 0
    %342 = vmatpush1.bf16.msra.mxu0 0
    %343 = vmatprep.subr.bf16.mxu0 0
    %344 = vmatpush1.bf16.msra.mxu0 0
    %345 = vmatprep.subr.bf16.mxu0 0
    %346 = vmatpush1.bf16.msra.mxu0 0
    %347 = vmatprep.subr.bf16.mxu0 0
    %348 = vmatpush1.bf16.msra.mxu0 0
    %349 = vmatprep.subr.bf16.mxu0 0
    %350 = vmatpush1.bf16.msra.mxu0 0
    %351 = vmatprep.subr.bf16.mxu0 0
    %352 = vmatpush1.bf16.msra.mxu0 0
    %353 = vmatprep.subr.bf16.mxu0 0
    %354 = vmatpush1.bf16.msra.mxu0 0
    %355 = vmatprep.subr.bf16.mxu0 0
    %356 = vmatpush1.bf16.msra.mxu0 0
    %357 = vmatprep.subr.bf16.mxu0 0
    %358 = vmatpush1.bf16.msra.mxu0 0
    %359 = vmatprep.subr.bf16.mxu0 0
    %360 = vmatpush1.bf16.msra.mxu0 0
    %361 = vmatprep.subr.bf16.mxu0 0
    %362 = vmatpush1.bf16.msra.mxu0 0
    %363 = vmatprep.subr.bf16.mxu0 0
    %364 = vmatpush1.bf16.msra.mxu0 0
    %365 = vmatprep.mubr.bf16.mxu0 0
    %366 = vmatmul.mubr.bf16.gmra.mrb[0].mxu0 %v331
    %v367 = vpop.f32.mrb[0].mxu0
    %v368 = vadd.f32 0.0, %v367
    %v369 = vpop.f32.mrb[0].mxu0
    %v370 = vadd.f32 0.0, %v369
    %v371 = vpop.f32.mrb[0].mxu0
    %v372 = vpop.f32.mrb[0].mxu0
    %373 = vdwg.mxu0
    %v374 = vsub.f32 %v368, %v82
    %v375 = vsub.f32 %v370, %v83
    %v376 = vand.u32 2147483647, %v374
    %v377 = vand.u32 2147483647, %v375
    %v378 = vrot.slane %v376, 4
    %v379 = vadd.f32 %v376, %v378
    %v380 = vrot.slane %v379, 2
    %v381 = vadd.f32 %v379, %v380
    %v382 = vrot.slane %v381, 1
    %v383 = vadd.f32 %v381, %v382
    %v384 = vrot.slane %v377, 4
    %v385 = vadd.f32 %v377, %v384
    %v386 = vrot.slane %v385, 2
    %v387 = vadd.f32 %v385, %v386
    %v388 = vrot.slane %v387, 1
    %v389 = vadd.f32 %v387, %v388
    %s390 = sld [smem:[#allocation2]]
    %v391 = vmul.f32 %v383, %v38
    %v392 = vmul.f32 %v389, %v39
    %v395 = vrot.slane %v391, 4
    %v396 = vrot.slane %v392, 4
    %vm399 = vcmask 1040384
    %v400 = vsel %vm399, %v395, 0.0
    %v401 = vsel %vm399, %v396, 0.0
    %v402 = vadd.f32 %v400, %v401
    %403 = vadd.xlane.f32.xlu0 %v402
    %v404 = vpop.xlane.xlu0 %403
    %v405 = vrot.slane %v404, 4
    %v406 = vadd.f32 %v404, %v405
    %v407 = vrot.slane %v406, 2
    %v408 = vadd.f32 %v406, %v407
    %v409 = vrot.slane %v408, 1
    %v410 = vadd.f32 %v408, %v409
    %s411 = vtos %v410
    %s412 = sadd.f32 %s390, %s411
    %s413 = scalar_lea.smem [#allocation2], 0
    %414 = sst [smem:[%s413]] %s412
    // Predicated region
    $region34: #{gaussian_diffusion_forward.5} parent=1 // pred_check
      %p415 = pneg %p28
    $region35: #{gaussian_diffusion_forward.5} parent=1 // pred_check_branch
      %417 = sbr.rel (%p415) target = $region37
    $region36: #{gaussian_diffusion_forward.5} parent=1 // pred_region
      %s418 = sld [smem:[#allocation2]]
      %s419 = scalar_lea.smem [#allocation3], 0
      %420 = sst [smem:[%s419]] %s418
    $region37: #{gaussian_diffusion_forward.5} parent=1 // pred_fallthru
      _
    // Predicated region
    $region38: #{gaussian_diffusion_forward.5} parent=1 // pred_check
      _
    $region39: #{gaussian_diffusion_forward.5} parent=1 // pred_check_branch
      %422 = sbr.rel (0) target = $region41
    $region40: #{gaussian_diffusion_forward.5} parent=1 // pred_region
      %s424 = ssub.s32 16, 16
      %425 = vsyncadd [#allocation4], %s424
      %428 = dma.smem_to_hbm [#allocation3], 16, %s7, [#allocation4]
    $region41: #{gaussian_diffusion_forward.5} parent=1 // pred_fallthru
      _
    // Predicated region
    $region42: #{gaussian_diffusion_forward.5} parent=1 // pred_check
      _
    $region43: #{gaussian_diffusion_forward.5} parent=1 // pred_check_branch
      %430 = sbr.rel (0) target = $region45
    $region44: #{gaussian_diffusion_forward.5} parent=1 // pred_region
      %431 = dma.done [#allocation4], 16
    $region45: #{gaussian_diffusion_forward.5} parent=1 // pred_fallthru
      _
    %432 = sfence
    %433 = vsyncpa [#allocation4], 1

</llo_original>
